<compile_context>
chip_gen: v7x
topology: tpu7x:2x2x1
jax: 0.10.0
libtpu: 0.0.40
codegen_flags: <defaults>
</compile_context>

<pallas_src>
import functools

import jax
import jax.numpy as jnp
from jax.experimental import pallas as pl
from jax.experimental.pallas import tpu as pltpu


# Set to jnp.bfloat16 on v6e/v7x for higher MXU throughput and half the A/W
# bytes through HBM/VMEM (accumulation stays f32); relax the reference
# tolerance accordingly.  Default f32 so the strict 1e-4 check holds.
MATMUL_DTYPE = jnp.float32

CONV_BLOCK_M = 1024      # row tile for the conv/im2col matmuls (small K)
FC_BLOCK_M = 512         # row tile for the fc head (larger K per row)

VMEM_LIMIT_BYTES = 32 * 1024 * 1024


def _round_up(x, m):
    return ((x + m - 1) // m) * m


# ---------------------------------------------------------------------------
# Fused MLP kernel: h = a; for each layer: h = (relu?)(h @ W + b); out = h
# ---------------------------------------------------------------------------
def _mlp_kernel(*refs, num_layers, relus):
    a_ref = refs[0]
    o_ref = refs[-1]
    h = a_ref[...]
    for l in range(num_layers):
        w = refs[1 + 2 * l][...]
        b = refs[2 + 2 * l][...]
        acc = jnp.dot(h, w, preferred_element_type=jnp.float32)   # MXU
        acc = acc + b                                              # f32 VPU
        if relus[l]:
            acc = jnp.maximum(acc, 0.0)
        h = acc
        if l + 1 < num_layers:
            # match next layer's MXU operand dtype (no-op for f32 weights)
            h = h.astype(refs[1 + 2 * (l + 1)].dtype)
    o_ref[...] = h.astype(o_ref.dtype)


def pallas_mlp(a, layers, *, block_m=FC_BLOCK_M, matmul_dtype=MATMUL_DTYPE):
    """Fused chain of matmul+bias(+ReLU) layers in one pallas_call.

    a:      (M, K0) activations.
    layers: sequence of (W: (K_i, O_i), b: (O_i,), relu: bool) with O_i == K_{i+1}.

    M is tiled over a 1-D "parallel" grid (ragged last block handled by Pallas,
    no host-side padding); weights/biases are full-array blocks with constant
    index maps that stay resident in VMEM across all grid steps (single-buffered
    when pipeline_mode=pl.Buffered(1) is available).
    """
    M, K0 = a.shape
    a = a.astype(matmul_dtype)
    out_dim = layers[-1][0].shape[1]

    if M <= block_m:
        # Keep >= 2 grid steps for large M so the "parallel" axis can shard
        # across both TensorCores on v7x; otherwise one full-size block.
        tm = _round_up(pl.cdiv(M, 2), 8) if M > 512 else M
    else:
        tm = block_m
    grid_m = pl.cdiv(M, tm)

    args = [a]
    relus = []
    wb_shapes = []
    for w, b, relu in layers:
        K, O = w.shape
        args.append(w.astype(matmul_dtype))
        args.append(b.reshape(1, O).astype(jnp.float32))
        relus.append(relu)
        wb_shapes.append((K, O))

    kernel = functools.partial(_mlp_kernel, num_layers=len(layers),
                               relus=tuple(relus))

    def build_in_specs(single_buffer_resident):
        resident_kwargs = {}
        if single_buffer_resident and hasattr(pl, "Buffered"):
            # Constant blocks never change across the grid: single-buffer them
            # to halve their resident VMEM footprint.
            resident_kwargs = dict(pipeline_mode=pl.Buffered(1))
        specs = [pl.BlockSpec((tm, K0), lambda i: (i, 0))]
        for K, O in wb_shapes:
            specs.append(pl.BlockSpec((K, O), lambda i: (0, 0), **resident_kwargs))
            specs.append(pl.BlockSpec((1, O), lambda i: (0, 0), **resident_kwargs))
        return specs

    def run(in_specs):
        return pl.pallas_call(
            kernel,
            out_shape=jax.ShapeDtypeStruct((M, out_dim), jnp.float32),
            grid=(grid_m,),
            in_specs=in_specs,
            out_specs=pl.BlockSpec((tm, out_dim), lambda i: (i, 0)),
            compiler_params=pltpu.CompilerParams(
                dimension_semantics=("parallel",),
                vmem_limit_bytes=VMEM_LIMIT_BYTES,
            ),
        )(*args)

    try:
        return run(build_in_specs(True))
    except Exception:
        # pipeline_mode=pl.Buffered(1) not supported on this jax/Mosaic build;
        # fall back to default double-buffered resident blocks.
        return run(build_in_specs(False))


# ---------------------------------------------------------------------------
# Conv2d (channels-last, VALID, stride s) via im2col + fused matmul kernel
# ---------------------------------------------------------------------------
def _im2col_nhwc(x, kh, kw, stride):
    """x: (N, H, W, C) -> patches (N*OH*OW, kh*kw*C), columns in (kh, kw, C) order."""
    N, H, W, C = x.shape
    OH = (H - kh) // stride + 1
    OW = (W - kw) // stride + 1
    cols = []
    for i in range(kh):
        for j in range(kw):
            cols.append(x[:, i:i + stride * OH:stride, j:j + stride * OW:stride, :])
    p = jnp.stack(cols, axis=3)                          # (N, OH, OW, kh*kw, C)
    return p.reshape(N * OH * OW, kh * kw * C), OH, OW


def conv2d_nhwc_pallas(x, w_mat, b, kh, kw, stride, *, relu=True,
                       block_m=CONV_BLOCK_M, matmul_dtype=MATMUL_DTYPE):
    """x: (N,H,W,C); w_mat: (kh*kw*C, O) matmul-form weights; b: (O,). NHWC out."""
    N = x.shape[0]
    # Emit patches already in the matmul dtype so the (expanded) patch matrix
    # is written to HBM at half width when bf16 is enabled.
    patches, OH, OW = _im2col_nhwc(x.astype(matmul_dtype), kh, kw, stride)
    out = pallas_mlp(patches, [(w_mat, b, relu)], block_m=block_m,
                     matmul_dtype=matmul_dtype)
    return out.reshape(N, OH, OW, w_mat.shape[1])


# ---------------------------------------------------------------------------
# DQN parameters (PyTorch layouts) + one-time kernel-friendly prep
# ---------------------------------------------------------------------------
def _conv_out(h, k, s):
    return (h - k) // s + 1


def init_dqn_params(key, input_dim, output_dim):
    C, H, W = input_dim
    h1, w1 = _conv_out(H, 8, 4), _conv_out(W, 8, 4)
    h2, w2 = _conv_out(h1, 4, 2), _conv_out(w1, 4, 2)
    h3, w3 = _conv_out(h2, 3, 1), _conv_out(w2, 3, 1)
    conv_output_size = 64 * h3 * w3

    def uinit(k, shape, fan_in):
        bound = 1.0 / jnp.sqrt(float(fan_in))
        return jax.random.uniform(k, shape, jnp.float32, -bound, bound)

    ks = jax.random.split(key, 10)
    params = {
        "w1": uinit(ks[0], (32, C, 8, 8), C * 8 * 8),
        "b1": uinit(ks[1], (32,), C * 8 * 8),
        "w2": uinit(ks[2], (64, 32, 4, 4), 32 * 4 * 4),
        "b2": uinit(ks[3], (64,), 32 * 4 * 4),
        "w3": uinit(ks[4], (64, 64, 3, 3), 64 * 3 * 3),
        "b3": uinit(ks[5], (64,), 64 * 3 * 3),
        "wf1": uinit(ks[6], (512, conv_output_size), conv_output_size),  # (out,in)
        "bf1": uinit(ks[7], (512,), conv_output_size),
        "wf2": uinit(ks[8], (output_dim, 512), 512),
        "bf2": uinit(ks[9], (output_dim,), 512),
    }
    return params, (h3, w3)


def prepare_params(params, conv3_hw):
    """One-time transforms: conv weights -> (kh*kw*C, O) matmul form matching the
    NHWC im2col column order, x/255 folded into conv1, fc weights pre-transposed,
    fc1 columns permuted from NCHW-flatten to NHWC-flatten order, and fc2
    weight/bias zero-padded to a lane-dense (multiple-of-128) output width."""
    H3, W3 = conv3_hw

    def conv_mat(w):                      # (O, C, kh, kw) -> (kh*kw*C, O)
        O, C, kh, kw = w.shape
        return jnp.transpose(w, (2, 3, 1, 0)).reshape(kh * kw * C, O)

    wf1 = params["wf1"].reshape(512, 64, H3, W3).transpose(0, 2, 3, 1)  # (512,H3,W3,64)

    out_dim = params["wf2"].shape[0]
    padded_out = _round_up(out_dim, 128)                 # lane-dense fc2 output
    wf2m = params["wf2"].T                               # (512, out_dim)
    bf2 = params["bf2"]
    if padded_out != out_dim:
        wf2m = jnp.pad(wf2m, ((0, 0), (0, padded_out - out_dim)))
        bf2 = jnp.pad(bf2, (0, padded_out - out_dim))

    return {
        "w1m": conv_mat(params["w1"]) * (1.0 / 255.0),   # fold x/255 into conv1
        "b1": params["b1"],
        "w2m": conv_mat(params["w2"]), "b2": params["b2"],
        "w3m": conv_mat(params["w3"]), "b3": params["b3"],
        "wf1m": wf1.reshape(512, H3 * W3 * 64).T,        # (F, 512)
        "bf1": params["bf1"],
        "wf2m": wf2m,                                    # (512, padded_out)
        "bf2": bf2,
        "out_dim": out_dim,
    }


# ---------------------------------------------------------------------------
# Forward pass (Pallas) and pure-JAX reference
# ---------------------------------------------------------------------------
def dqn_forward(prep, x_nchw, *, conv_block_m=CONV_BLOCK_M, fc_block_m=FC_BLOCK_M):
    """x_nchw: (N, C, H, W) f32 in [0, 255] (PyTorch layout). Returns (N, out_dim)."""
    x = jnp.transpose(x_nchw, (0, 2, 3, 1))                     # channels-last once
    h = conv2d_nhwc_pallas(x, prep["w1m"], prep["b1"], 8, 8, 4, relu=True,
                           block_m=conv_block_m)
    h = conv2d_nhwc_pallas(h, prep["w2m"], prep["b2"], 4, 4, 2, relu=True,
                           block_m=conv_block_m)
    # Tail: conv3 + flatten + fc1 + fc2.
    patches3, OH3, OW3 = _im2col_nhwc(h, 3, 3, 1)
    if OH3 * OW3 == 1:
        # conv3 output is 1x1x64 per sample: fuse conv3/fc1/fc2 into one kernel;
        # the 64- and 512-wide hidden activations stay in VMEM.
        q = pallas_mlp(
            patches3,
            [(prep["w3m"], prep["b3"], True),
             (prep["wf1m"], prep["bf1"], True),
             (prep["wf2m"], prep["bf2"], False)],
            block_m=fc_block_m)
    else:
        # General spatial size: conv3 alone, then fused fc1+fc2 head.
        h3 = pallas_mlp(patches3, [(prep["w3m"], prep["b3"], True)],
                        block_m=conv_block_m)
        h3 = h3.reshape(x.shape[0], OH3 * OW3 * 64)             # NHWC flatten
        q = pallas_mlp(
            h3,
            [(prep["wf1m"], prep["bf1"], True),
             (prep["wf2m"], prep["bf2"], False)],
            block_m=fc_block_m)
    return q[:, : prep["out_dim"]]                              # drop padded lanes


def dqn_reference(params, x):
    h = x / 255.0

    def conv(h, w, b, s):
        out = jax.lax.conv_general_dilated(
            h, w, (s, s), "VALID", dimension_numbers=("NCHW", "OIHW", "NCHW"))
        return jax.nn.relu(out + b[None, :, None, None])

    h = conv(h, params["w1"], params["b1"], 4)
    h = conv(h, params["w2"], params["b2"], 2)
    h = conv(h, params["w3"], params["b3"], 1)
    h = h.reshape(h.shape[0], -1)
    h = jax.nn.relu(h @ params["wf1"].T + params["bf1"])
    return h @ params["wf2"].T + params["bf2"]


if __name__ == "__main__":
    key = jax.random.PRNGKey(0)
    k_param, k_x, k_a, k_w, k_a2 = jax.random.split(key, 5)

    # (C, H, W) = (4, 36, 36): conv stack gives 8 -> 3 -> 1 spatial, so the fused
    # conv3/fc1/fc2 tail path is exercised.  batch=2, 6 actions.
    input_dim = (4, 36, 36)
    output_dim = 6
    batch = 2

    params, conv3_hw = init_dqn_params(k_param, input_dim, output_dim)
    prep = prepare_params(params, conv3_hw)
    x = jax.random.uniform(k_x, (batch,) + input_dim, jnp.float32, 0.0, 255.0)

    q_pallas = jax.block_until_ready(dqn_forward(prep, x))
    q_ref = jax.block_until_ready(dqn_reference(params, x))
    assert q_pallas.shape == (batch, output_dim)
    assert jnp.allclose(q_pallas, q_ref, rtol=1e-4, atol=1e-4), "mismatch vs reference"

    # Exercise the M-tiled ragged-last-block path (no host-side padding) and
    # compare against both the single-block path and a plain-JAX reference.
    a = jax.random.normal(k_a, (300, 256), jnp.float32)
    w = jax.random.normal(k_w, (256, 128), jnp.float32) * 0.05
    b = jnp.zeros((128,), jnp.float32)
    y_ref = jnp.maximum(jnp.dot(a, w, precision="highest") + b, 0.0)
    y_tiled = jax.block_until_ready(pallas_mlp(a, [(w, b, True)], block_m=128))
    y_full = jax.block_until_ready(pallas_mlp(a, [(w, b, True)], block_m=512))
    assert jnp.allclose(y_tiled, y_full, rtol=1e-5, atol=1e-5), "tiled-path mismatch"
    assert jnp.allclose(y_tiled, y_ref, rtol=1e-4, atol=1e-4), "tiled vs jnp mismatch"

    # Exercise the "split a single large block into >=2 grid steps" (v7x 2-TC)
    # path: M=600 <= block_m but > 512 -> tm=304, grid=2, ragged last block.
    a2 = jax.random.normal(k_a2, (600, 256), jnp.float32)
    y2_ref = jnp.maximum(jnp.dot(a2, w, precision="highest") + b, 0.0)
    y2 = jax.block_until_ready(pallas_mlp(a2, [(w, b, True)], block_m=1024))
    assert jnp.allclose(y2, y2_ref, rtol=1e-4, atol=1e-4), "split-block mismatch"

    print("KERNEL_OK")
</pallas_src>

<mosaic_0001>
module attributes {stable_mosaic.version = 11 : i64} {
  func.func @_mlp_kernel(%arg0: i32, %arg1: memref<128x256xf32, #tpu.memory_space<vmem>>, %arg2: memref<256x32xf32, #tpu.memory_space<vmem>>, %arg3: memref<1x32xf32, #tpu.memory_space<vmem>>, %arg4: memref<128x32xf32, #tpu.memory_space<vmem>>) attributes {dimension_semantics = [#tpu.dimension_semantics<parallel>], iteration_bounds = array<i64: 1>, scalar_prefetch = 0 : i64, scratch_operands = 0 : i64, tpu.core_type = #tpu.core_type<tc>, window_params = [{transform_indices = @transform_0, window_bounds = array<i64: 128, 256>}, {pipeline_mode = #tpu.pipeline_mode<synchronous>, transform_indices = @transform_1, window_bounds = array<i64: 256, 32>}, {pipeline_mode = #tpu.pipeline_mode<synchronous>, transform_indices = @transform_2, window_bounds = array<i64: 1, 32>}, {transform_indices = @transform_3, window_bounds = array<i64: 128, 32>}]} {
    %c0 = arith.constant 0 : index
    %c0_0 = arith.constant 0 : index
    %0 = vector.load %arg1[%c0, %c0_0] : memref<128x256xf32, #tpu.memory_space<vmem>>, vector<128x256xf32>
    %c0_1 = arith.constant 0 : index
    %c0_2 = arith.constant 0 : index
    %1 = vector.load %arg2[%c0_1, %c0_2] : memref<256x32xf32, #tpu.memory_space<vmem>>, vector<256x32xf32>
    %c0_3 = arith.constant 0 : index
    %c0_4 = arith.constant 0 : index
    %2 = vector.load %arg3[%c0_3, %c0_4] : memref<1x32xf32, #tpu.memory_space<vmem>>, vector<1x32xf32>
    %cst = arith.constant dense<0.000000e+00> : vector<128x32xf32>
    %3 = tpu.matmul %0, %1, %cst {dimension_numbers = #tpu.dot_dimension_numbers<[1], [0], [0], [1], [0, 0, 1, 1], [], []>} : vector<128x256xf32>, vector<256x32xf32>, vector<128x32xf32> -> vector<128x32xf32>
    %4 = vector.broadcast %2 : vector<1x32xf32> to vector<128x32xf32>
    %5 = arith.addf %3, %4 : vector<128x32xf32>
    %cst_5 = arith.constant 0.000000e+00 : f32
    %6 = vector.broadcast %cst_5 : f32 to vector<128x32xf32>
    %7 = arith.maximumf %5, %6 : vector<128x32xf32>
    %c0_6 = arith.constant 0 : index
    %c0_7 = arith.constant 0 : index
    %8 = vector.load %arg4[%c0_6, %c0_7] : memref<128x32xf32, #tpu.memory_space<vmem>>, vector<128x32xf32>
    tpu.vector_store %arg4[%c0_6, %c0_7], %7 {strides = array<i32>} : memref<128x32xf32, #tpu.memory_space<vmem>>, vector<128x32xf32>,
    return
  }
  func.func @transform_0(%arg0: i32) -> (i32, i32) {
    %c0_i32 = arith.constant 0 : i32
    %c0_i32_0 = arith.constant 0 : i32
    return %arg0, %c0_i32 : i32, i32
  }
  func.func @transform_1(%arg0: i32) -> (i32, i32) {
    %c0_i32 = arith.constant 0 : i32
    %c0_i32_0 = arith.constant 0 : i32
    %c0_i32_1 = arith.constant 0 : i32
    return %c0_i32, %c0_i32_0 : i32, i32
  }
  func.func @transform_2(%arg0: i32) -> (i32, i32) {
    %c0_i32 = arith.constant 0 : i32
    %c0_i32_0 = arith.constant 0 : i32
    %c0_i32_1 = arith.constant 0 : i32
    return %c0_i32, %c0_i32_0 : i32, i32
  }
  func.func @transform_3(%arg0: i32) -> (i32, i32) {
    %c0_i32 = arith.constant 0 : i32
    %c0_i32_0 = arith.constant 0 : i32
    return %arg0, %c0_i32 : i32, i32
  }
}

module attributes {stable_mosaic.version = 11 : i64} {
  func.func @_mlp_kernel(%arg0: i32, %arg1: memref<128x256xf32, #tpu.memory_space<vmem>>, %arg2: memref<256x32xf32, #tpu.memory_space<vmem>>, %arg3: memref<1x32xf32, #tpu.memory_space<vmem>>, %arg4: memref<128x32xf32, #tpu.memory_space<vmem>>) attributes {dimension_semantics = [#tpu.dimension_semantics<parallel>], iteration_bounds = array<i64: 1>, scalar_prefetch = 0 : i64, scratch_operands = 0 : i64, tpu.core_type = #tpu.core_type<tc>, window_params = [{transform_indices = @transform_0, window_bounds = array<i64: 128, 256>}, {pipeline_mode = #tpu.pipeline_mode<synchronous>, transform_indices = @transform_1, window_bounds = array<i64: 256, 32>}, {pipeline_mode = #tpu.pipeline_mode<synchronous>, transform_indices = @transform_2, window_bounds = array<i64: 1, 32>}, {transform_indices = @transform_3, window_bounds = array<i64: 128, 32>}]} {
    %c0 = arith.constant 0 : index
    %c0_0 = arith.constant 0 : index
    %0 = vector.load %arg1[%c0, %c0_0] : memref<128x256xf32, #tpu.memory_space<vmem>>, vector<128x256xf32>
    %c0_1 = arith.constant 0 : index
    %c0_2 = arith.constant 0 : index
    %1 = vector.load %arg2[%c0_1, %c0_2] : memref<256x32xf32, #tpu.memory_space<vmem>>, vector<256x32xf32>
    %c0_3 = arith.constant 0 : index
    %c0_4 = arith.constant 0 : index
    %2 = vector.load %arg3[%c0_3, %c0_4] : memref<1x32xf32, #tpu.memory_space<vmem>>, vector<1x32xf32>
    %cst = arith.constant dense<0.000000e+00> : vector<128x32xf32>
    %3 = tpu.matmul %0, %1, %cst {dimension_numbers = #tpu.dot_dimension_numbers<[1], [0], [0], [1], [0, 0, 1, 1], [], []>} : vector<128x256xf32>, vector<256x32xf32>, vector<128x32xf32> -> vector<128x32xf32>
    %4 = vector.broadcast %2 : vector<1x32xf32> to vector<128x32xf32>
    %5 = arith.addf %3, %4 : vector<128x32xf32>
    %cst_5 = arith.constant 0.000000e+00 : f32
    %6 = vector.broadcast %cst_5 : f32 to vector<128x32xf32>
    %7 = arith.maximumf %5, %6 : vector<128x32xf32>
    %c0_6 = arith.constant 0 : index
    %c0_7 = arith.constant 0 : index
    %8 = vector.load %arg4[%c0_6, %c0_7] : memref<128x32xf32, #tpu.memory_space<vmem>>, vector<128x32xf32>
    tpu.vector_store %arg4[%c0_6, %c0_7], %7 {strides = array<i32>} : memref<128x32xf32, #tpu.memory_space<vmem>>, vector<128x32xf32>,
    return
  }
  func.func @transform_0(%arg0: i32) -> (i32, i32) {
    %c0_i32 = arith.constant 0 : i32
    %c0_i32_0 = arith.constant 0 : i32
    return %arg0, %c0_i32 : i32, i32
  }
  func.func @transform_1(%arg0: i32) -> (i32, i32) {
    %c0_i32 = arith.constant 0 : i32
    %c0_i32_0 = arith.constant 0 : i32
    %c0_i32_1 = arith.constant 0 : i32
    return %c0_i32, %c0_i32_0 : i32, i32
  }
  func.func @transform_2(%arg0: i32) -> (i32, i32) {
    %c0_i32 = arith.constant 0 : i32
    %c0_i32_0 = arith.constant 0 : i32
    %c0_i32_1 = arith.constant 0 : i32
    return %c0_i32, %c0_i32_0 : i32, i32
  }
  func.func @transform_3(%arg0: i32) -> (i32, i32) {
    %c0_i32 = arith.constant 0 : i32
    %c0_i32_0 = arith.constant 0 : i32
    return %arg0, %c0_i32 : i32, i32
  }
}

</mosaic_0001>

<llo_original>
// kernel: tpu_custom_call.1
$region0: #{tpu_custom_call.1}
  #allocation0 [shape = 'u32[]', space=smem, size = 0x4, offset = 0x4, fixed_abs, tag = 'smem constant byte address 0x4 - core index']
  #allocation1 [shape = 'u32[144,128]{1,0:T(1,128)}', space=vmem, size = 0x12000, scoped, tag = 'internal scratch']
  %s0 = inlined_call_operand.vmem [shape: f32[128,256], index: 0, kind: input, shape index: {}]
  %s1 = inlined_call_operand.vmem [shape: f32[256,32], index: 1, kind: input, shape index: {}]
  %s2 = inlined_call_operand.vmem [shape: f32[1,32], index: 2, kind: input, shape index: {}]
  %s3 = inlined_call_operand.vmem [shape: f32[128,32], index: 3, kind: output, shape index: {}]
  %s4 = sld [smem:[#allocation0]]
  $region22: #{tpu_custom_call.1} parent=0
    _
  %s6 = ssub.s32 1, %s4
  %s7 = scalar_select 0, %s6, %s4
  // Predicated region
  $region2: #{tpu_custom_call.1} parent=0 // pred_check
    _
  $region3: #{tpu_custom_call.1} parent=0 // pred_check_branch
    %9 = sbr.rel (0) target = $region5
  $region4: #{tpu_custom_call.1} parent=0 // pred_region
    _
  $region5: #{tpu_custom_call.1} parent=0 // pred_fallthru
    _
  // Predicated region
  $region6: #{tpu_custom_call.1} parent=0 // pred_check
    _
  $region7: #{tpu_custom_call.1} parent=0 // pred_check_branch
    %11 = sbr.rel (0) target = $region9
  $region8: #{tpu_custom_call.1} parent=0 // pred_region
    _
  $region9: #{tpu_custom_call.1} parent=0 // pred_fallthru
    _
  // Predicated region
  $region10: #{tpu_custom_call.1} parent=0 // pred_check
    _
  $region11: #{tpu_custom_call.1} parent=0 // pred_check_branch
    %13 = sbr.rel (0) target = $region13
  $region12: #{tpu_custom_call.1} parent=0 // pred_region
    _
  $region13: #{tpu_custom_call.1} parent=0 // pred_fallthru
    _
  %v14 = vld [vmem:[%s0] sm:$0xff]
  %v15 = vld [vmem:[%s0 + $0x8] sm:$0xff]
  %v16 = vld [vmem:[%s0 + $0x10] sm:$0xff]
  %v17 = vld [vmem:[%s0 + $0x18] sm:$0xff]
  %v18 = vld [vmem:[%s0 + $0x20] sm:$0xff]
  %v19 = vld [vmem:[%s0 + $0x28] sm:$0xff]
  %v20 = vld [vmem:[%s0 + $0x30] sm:$0xff]
  %v21 = vld [vmem:[%s0 + $0x38] sm:$0xff]
  %v22 = vld [vmem:[%s0 + $0x40] sm:$0xff]
  %v23 = vld [vmem:[%s0 + $0x48] sm:$0xff]
  %v24 = vld [vmem:[%s0 + $0x50] sm:$0xff]
  %v25 = vld [vmem:[%s0 + $0x58] sm:$0xff]
  %v26 = vld [vmem:[%s0 + $0x60] sm:$0xff]
  %v27 = vld [vmem:[%s0 + $0x68] sm:$0xff]
  %v28 = vld [vmem:[%s0 + $0x70] sm:$0xff]
  %v29 = vld [vmem:[%s0 + $0x78] sm:$0xff]
  %v30 = vld [vmem:[%s0 + $0x80] sm:$0xff]
  %v31 = vld [vmem:[%s0 + $0x88] sm:$0xff]
  %v32 = vld [vmem:[%s0 + $0x90] sm:$0xff]
  %v33 = vld [vmem:[%s0 + $0x98] sm:$0xff]
  %v34 = vld [vmem:[%s0 + $0xa0] sm:$0xff]
  %v35 = vld [vmem:[%s0 + $0xa8] sm:$0xff]
  %v36 = vld [vmem:[%s0 + $0xb0] sm:$0xff]
  %v37 = vld [vmem:[%s0 + $0xb8] sm:$0xff]
  %v38 = vld [vmem:[%s0 + $0xc0] sm:$0xff]
  %v39 = vld [vmem:[%s0 + $0xc8] sm:$0xff]
  %v40 = vld [vmem:[%s0 + $0xd0] sm:$0xff]
  %v41 = vld [vmem:[%s0 + $0xd8] sm:$0xff]
  %v42 = vld [vmem:[%s0 + $0xe0] sm:$0xff]
  %v43 = vld [vmem:[%s0 + $0xe8] sm:$0xff]
  %v44 = vld [vmem:[%s0 + $0xf0] sm:$0xff]
  %v45 = vld [vmem:[%s0 + $0xf8] sm:$0xff]
  %v46 = vld [vmem:[%s1] sm:$0xff]
  %v47 = vld [vmem:[%s1 + $0x8] sm:$0xff]
  %v48 = vld [vmem:[%s1 + $0x10] sm:$0xff]
  %v49 = vld [vmem:[%s1 + $0x18] sm:$0xff]
  %v50 = vld [vmem:[%s1 + $0x20] sm:$0xff]
  %v51 = vld [vmem:[%s1 + $0x28] sm:$0xff]
  %v52 = vld [vmem:[%s1 + $0x30] sm:$0xff]
  %v53 = vld [vmem:[%s1 + $0x38] sm:$0xff]
  %v54 = vld [vmem:[%s1 + $0x40] sm:$0xff]
  %v55 = vld [vmem:[%s1 + $0x48] sm:$0xff]
  %v56 = vld [vmem:[%s1 + $0x50] sm:$0xff]
  %v57 = vld [vmem:[%s1 + $0x58] sm:$0xff]
  %v58 = vld [vmem:[%s1 + $0x60] sm:$0xff]
  %v59 = vld [vmem:[%s1 + $0x68] sm:$0xff]
  %v60 = vld [vmem:[%s1 + $0x70] sm:$0xff]
  %v61 = vld [vmem:[%s1 + $0x78] sm:$0xff]
  %v62 = vld [vmem:[%s1 + $0x80] sm:$0xff]
  %v63 = vld [vmem:[%s1 + $0x88] sm:$0xff]
  %v64 = vld [vmem:[%s1 + $0x90] sm:$0xff]
  %v65 = vld [vmem:[%s1 + $0x98] sm:$0xff]
  %v66 = vld [vmem:[%s1 + $0xa0] sm:$0xff]
  %v67 = vld [vmem:[%s1 + $0xa8] sm:$0xff]
  %v68 = vld [vmem:[%s1 + $0xb0] sm:$0xff]
  %v69 = vld [vmem:[%s1 + $0xb8] sm:$0xff]
  %v70 = vld [vmem:[%s1 + $0xc0] sm:$0xff]
  %v71 = vld [vmem:[%s1 + $0xc8] sm:$0xff]
  %v72 = vld [vmem:[%s1 + $0xd0] sm:$0xff]
  %v73 = vld [vmem:[%s1 + $0xd8] sm:$0xff]
  %v74 = vld [vmem:[%s1 + $0xe0] sm:$0xff]
  %v75 = vld [vmem:[%s1 + $0xe8] sm:$0xff]
  %v76 = vld [vmem:[%s1 + $0xf0] sm:$0xff]
  %v77 = vld [vmem:[%s1 + $0xf8] sm:$0xff]
  %v78 = vld [vmem:[%s2] sm:$0x1]
  %v80 = vlaneseq
  %v81 = vshrl.u32 %v80, 7
  %v82 = vsub.s32 0, %v81
  %v83 = vrot.slane %v78, %v82
  %85 = vmatprep.subr.mxu0 0.0
  %86 = vmatpush1.msra.mxu0 %v46
  %87 = vmatprep.subr.mxu0 0.0
  %88 = vmatpush1.msra.mxu0 %v47
  %89 = vmatprep.subr.mxu0 0.0
  %90 = vmatpush1.msra.mxu0 %v48
  %91 = vmatprep.subr.mxu0 0.0
  %92 = vmatpush1.msra.mxu0 %v49
  %93 = vmatprep.subr.mxu0 0.0
  %94 = vmatpush1.msra.mxu0 %v50
  %95 = vmatprep.subr.mxu0 0.0
  %96 = vmatpush1.msra.mxu0 %v51
  %97 = vmatprep.subr.mxu0 0.0
  %98 = vmatpush1.msra.mxu0 %v52
  %99 = vmatprep.subr.mxu0 0.0
  %100 = vmatpush1.msra.mxu0 %v53
  %101 = vmatprep.subr.mxu0 0.0
  %102 = vmatpush1.msra.mxu0 %v54
  %103 = vmatprep.subr.mxu0 0.0
  %104 = vmatpush1.msra.mxu0 %v55
  %105 = vmatprep.subr.mxu0 0.0
  %106 = vmatpush1.msra.mxu0 %v56
  %107 = vmatprep.subr.mxu0 0.0
  %108 = vmatpush1.msra.mxu0 %v57
  %109 = vmatprep.subr.mxu0 0.0
  %110 = vmatpush1.msra.mxu0 %v58
  %111 = vmatprep.subr.mxu0 0.0
  %112 = vmatpush1.msra.mxu0 %v59
  %113 = vmatprep.subr.mxu0 0.0
  %114 = vmatpush1.msra.mxu0 %v60
  %115 = vmatprep.subr.mxu0 0.0
  %116 = vmatpush1.msra.mxu0 %v61
  %117 = vmatprep.subr.mxu0 0.0
  %118 = vmatpush1.msra.mxu0 %v62
  %119 = vmatprep.subr.mxu0 0.0
  %120 = vmatpush1.msra.mxu0 %v63
  %121 = vmatprep.subr.mxu0 0.0
  %122 = vmatpush1.msra.mxu0 %v64
  %123 = vmatprep.subr.mxu0 0.0
  %124 = vmatpush1.msra.mxu0 %v65
  %125 = vmatprep.subr.mxu0 0.0
  %126 = vmatpush1.msra.mxu0 %v66
  %127 = vmatprep.subr.mxu0 0.0
  %128 = vmatpush1.msra.mxu0 %v67
  %129 = vmatprep.subr.mxu0 0.0
  %130 = vmatpush1.msra.mxu0 %v68
  %131 = vmatprep.subr.mxu0 0.0
  %132 = vmatpush1.msra.mxu0 %v69
  %133 = vmatprep.subr.mxu0 0.0
  %134 = vmatpush1.msra.mxu0 %v70
  %135 = vmatprep.subr.mxu0 0.0
  %136 = vmatpush1.msra.mxu0 %v71
  %137 = vmatprep.subr.mxu0 0.0
  %138 = vmatpush1.msra.mxu0 %v72
  %139 = vmatprep.subr.mxu0 0.0
  %140 = vmatpush1.msra.mxu0 %v73
  %141 = vmatprep.subr.mxu0 0.0
  %142 = vmatpush1.msra.mxu0 %v74
  %143 = vmatprep.subr.mxu0 0.0
  %144 = vmatpush1.msra.mxu0 %v75
  %145 = vmatprep.subr.mxu0 0.0
  %146 = vmatpush1.msra.mxu0 %v76
  %147 = vmatprep.subr.mxu0 0.0
  %148 = vmatpush1.msra.mxu0 %v77
  %149 = vmatprep.mubr.f32.mxu0 %v15
  %150 = vmatmul.mubr.f32.gmra.mrb[0].mxu0 %v14
  %v151 = vpop.f32.mrb[0].mxu0
  %v152 = vadd.f32 %v83, %v151
  %v153 = vpop.f32.mrb[0].mxu0
  %154 = vmatprep.mubr.f32.mxu0 %v17
  %155 = vmatmul.mubr.f32.gmra.mrb[0].mxu0 %v16
  %v156 = vpop.f32.mrb[0].mxu0
  %v157 = vadd.f32 %v83, %v156
  %v158 = vpop.f32.mrb[0].mxu0
  %159 = vmatprep.mubr.f32.mxu0 %v19
  %160 = vmatmul.mubr.f32.gmra.mrb[0].mxu0 %v18
  %v161 = vpop.f32.mrb[0].mxu0
  %v162 = vadd.f32 %v83, %v161
  %v163 = vpop.f32.mrb[0].mxu0
  %164 = vmatprep.mubr.f32.mxu0 %v21
  %165 = vmatmul.mubr.f32.gmra.mrb[0].mxu0 %v20
  %v166 = vpop.f32.mrb[0].mxu0
  %v167 = vadd.f32 %v83, %v166
  %v168 = vpop.f32.mrb[0].mxu0
  %169 = vmatprep.mubr.f32.mxu0 %v23
  %170 = vmatmul.mubr.f32.gmra.mrb[0].mxu0 %v22
  %v171 = vpop.f32.mrb[0].mxu0
  %v172 = vadd.f32 %v83, %v171
  %v173 = vpop.f32.mrb[0].mxu0
  %174 = vmatprep.mubr.f32.mxu0 %v25
  %175 = vmatmul.mubr.f32.gmra.mrb[0].mxu0 %v24
  %v176 = vpop.f32.mrb[0].mxu0
  %v177 = vadd.f32 %v83, %v176
  %v178 = vpop.f32.mrb[0].mxu0
  %179 = vmatprep.mubr.f32.mxu0 %v27
  %180 = vmatmul.mubr.f32.gmra.mrb[0].mxu0 %v26
  %v181 = vpop.f32.mrb[0].mxu0
  %v182 = vadd.f32 %v83, %v181
  %v183 = vpop.f32.mrb[0].mxu0
  %184 = vmatprep.mubr.f32.mxu0 %v29
  %185 = vmatmul.mubr.f32.gmra.mrb[0].mxu0 %v28
  %v186 = vpop.f32.mrb[0].mxu0
  %v187 = vadd.f32 %v83, %v186
  %v188 = vpop.f32.mrb[0].mxu0
  %189 = vmatprep.mubr.f32.mxu0 %v31
  %190 = vmatmul.mubr.f32.gmra.mrb[0].mxu0 %v30
  %v191 = vpop.f32.mrb[0].mxu0
  %v192 = vadd.f32 %v83, %v191
  %v193 = vpop.f32.mrb[0].mxu0
  %194 = vmatprep.mubr.f32.mxu0 %v33
  %195 = vmatmul.mubr.f32.gmra.mrb[0].mxu0 %v32
  %v196 = vpop.f32.mrb[0].mxu0
  %v197 = vadd.f32 %v83, %v196
  %v198 = vpop.f32.mrb[0].mxu0
  %199 = vmatprep.mubr.f32.mxu0 %v35
  %200 = vmatmul.mubr.f32.gmra.mrb[0].mxu0 %v34
  %v201 = vpop.f32.mrb[0].mxu0
  %v202 = vadd.f32 %v83, %v201
  %v203 = vpop.f32.mrb[0].mxu0
  %204 = vmatprep.mubr.f32.mxu0 %v37
  %205 = vmatmul.mubr.f32.gmra.mrb[0].mxu0 %v36
  %v206 = vpop.f32.mrb[0].mxu0
  %v207 = vadd.f32 %v83, %v206
  %v208 = vpop.f32.mrb[0].mxu0
  %209 = vmatprep.mubr.f32.mxu0 %v39
  %210 = vmatmul.mubr.f32.gmra.mrb[0].mxu0 %v38
  %v211 = vpop.f32.mrb[0].mxu0
  %v212 = vadd.f32 %v83, %v211
  %v213 = vpop.f32.mrb[0].mxu0
  %214 = vmatprep.mubr.f32.mxu0 %v41
  %215 = vmatmul.mubr.f32.gmra.mrb[0].mxu0 %v40
  %v216 = vpop.f32.mrb[0].mxu0
  %v217 = vadd.f32 %v83, %v216
  %v218 = vpop.f32.mrb[0].mxu0
  %219 = vmatprep.mubr.f32.mxu0 %v43
  %220 = vmatmul.mubr.f32.gmra.mrb[0].mxu0 %v42
  %v221 = vpop.f32.mrb[0].mxu0
  %v222 = vadd.f32 %v83, %v221
  %v223 = vpop.f32.mrb[0].mxu0
  %224 = vmatprep.mubr.f32.mxu0 %v45
  %225 = vmatmul.mubr.f32.gmra.mrb[0].mxu0 %v44
  %v226 = vpop.f32.mrb[0].mxu0
  %v227 = vadd.f32 %v83, %v226
  %v228 = vpop.f32.mrb[0].mxu0
  %229 = vdwg.mxu0
  %v230 = vmax.f32 %v152, 0.0
  %v231 = vmax.f32 %v157, 0.0
  %v232 = vmax.f32 %v162, 0.0
  %v233 = vmax.f32 %v167, 0.0
  %v234 = vmax.f32 %v172, 0.0
  %v235 = vmax.f32 %v177, 0.0
  %v236 = vmax.f32 %v182, 0.0
  %v237 = vmax.f32 %v187, 0.0
  %v238 = vmax.f32 %v192, 0.0
  %v239 = vmax.f32 %v197, 0.0
  %v240 = vmax.f32 %v202, 0.0
  %v241 = vmax.f32 %v207, 0.0
  %v242 = vmax.f32 %v212, 0.0
  %v243 = vmax.f32 %v217, 0.0
  %v244 = vmax.f32 %v222, 0.0
  %v245 = vmax.f32 %v227, 0.0
  %vm246 = vcmask 261120
  %247 = vst.msk [vmem:[%s3] sm:$0xff] %vm246, %v230
  %248 = vst.msk [vmem:[%s3 + $0x8] sm:$0xff] %vm246, %v231
  %249 = vst.msk [vmem:[%s3 + $0x10] sm:$0xff] %vm246, %v232
  %250 = vst.msk [vmem:[%s3 + $0x18] sm:$0xff] %vm246, %v233
  %251 = vst.msk [vmem:[%s3 + $0x20] sm:$0xff] %vm246, %v234
  %252 = vst.msk [vmem:[%s3 + $0x28] sm:$0xff] %vm246, %v235
  %253 = vst.msk [vmem:[%s3 + $0x30] sm:$0xff] %vm246, %v236
  %254 = vst.msk [vmem:[%s3 + $0x38] sm:$0xff] %vm246, %v237
  %255 = vst.msk [vmem:[%s3 + $0x40] sm:$0xff] %vm246, %v238
  %256 = vst.msk [vmem:[%s3 + $0x48] sm:$0xff] %vm246, %v239
  %257 = vst.msk [vmem:[%s3 + $0x50] sm:$0xff] %vm246, %v240
  %258 = vst.msk [vmem:[%s3 + $0x58] sm:$0xff] %vm246, %v241
  %259 = vst.msk [vmem:[%s3 + $0x60] sm:$0xff] %vm246, %v242
  %260 = vst.msk [vmem:[%s3 + $0x68] sm:$0xff] %vm246, %v243
  %261 = vst.msk [vmem:[%s3 + $0x70] sm:$0xff] %vm246, %v244
  %262 = vst.msk [vmem:[%s3 + $0x78] sm:$0xff] %vm246, %v245
  // Predicated region
  $region14: #{tpu_custom_call.1} parent=0 // pred_check
    _
  $region15: #{tpu_custom_call.1} parent=0 // pred_check_branch
    %264 = sbr.rel (0) target = $region17
  $region16: #{tpu_custom_call.1} parent=0 // pred_region
    _
  $region17: #{tpu_custom_call.1} parent=0 // pred_fallthru
    _
  // Predicated region
  $region18: #{tpu_custom_call.1} parent=0 // pred_check
    _
  $region19: #{tpu_custom_call.1} parent=0 // pred_check_branch
    %266 = sbr.rel (0) target = $region21
  $region20: #{tpu_custom_call.1} parent=0 // pred_region
    _
  $region21: #{tpu_custom_call.1} parent=0 // pred_fallthru
    _

// kernel: tpu_custom_call.1
$region0: #{tpu_custom_call.1}
  #allocation0 [shape = 'u32[]', space=smem, size = 0x4, offset = 0x4, fixed_abs, tag = 'smem constant byte address 0x4 - core index']
  #allocation1 [shape = 'u32[144,128]{1,0:T(1,128)}', space=vmem, size = 0x12000, scoped, tag = 'internal scratch']
  %s0 = inlined_call_operand.vmem [shape: f32[128,256], index: 0, kind: input, shape index: {}]
  %s1 = inlined_call_operand.vmem [shape: f32[256,32], index: 1, kind: input, shape index: {}]
  %s2 = inlined_call_operand.vmem [shape: f32[1,32], index: 2, kind: input, shape index: {}]
  %s3 = inlined_call_operand.vmem [shape: f32[128,32], index: 3, kind: output, shape index: {}]
  %s4 = sld [smem:[#allocation0]]
  $region22: #{tpu_custom_call.1} parent=0
    _
  %s6 = ssub.s32 1, %s4
  %s7 = scalar_select 0, %s6, %s4
  // Predicated region
  $region2: #{tpu_custom_call.1} parent=0 // pred_check
    _
  $region3: #{tpu_custom_call.1} parent=0 // pred_check_branch
    %9 = sbr.rel (0) target = $region5
  $region4: #{tpu_custom_call.1} parent=0 // pred_region
    _
  $region5: #{tpu_custom_call.1} parent=0 // pred_fallthru
    _
  // Predicated region
  $region6: #{tpu_custom_call.1} parent=0 // pred_check
    _
  $region7: #{tpu_custom_call.1} parent=0 // pred_check_branch
    %11 = sbr.rel (0) target = $region9
  $region8: #{tpu_custom_call.1} parent=0 // pred_region
    _
  $region9: #{tpu_custom_call.1} parent=0 // pred_fallthru
    _
  // Predicated region
  $region10: #{tpu_custom_call.1} parent=0 // pred_check
    _
  $region11: #{tpu_custom_call.1} parent=0 // pred_check_branch
    %13 = sbr.rel (0) target = $region13
  $region12: #{tpu_custom_call.1} parent=0 // pred_region
    _
  $region13: #{tpu_custom_call.1} parent=0 // pred_fallthru
    _
  %v14 = vld [vmem:[%s0] sm:$0xff]
  %v15 = vld [vmem:[%s0 + $0x8] sm:$0xff]
  %v16 = vld [vmem:[%s0 + $0x10] sm:$0xff]
  %v17 = vld [vmem:[%s0 + $0x18] sm:$0xff]
  %v18 = vld [vmem:[%s0 + $0x20] sm:$0xff]
  %v19 = vld [vmem:[%s0 + $0x28] sm:$0xff]
  %v20 = vld [vmem:[%s0 + $0x30] sm:$0xff]
  %v21 = vld [vmem:[%s0 + $0x38] sm:$0xff]
  %v22 = vld [vmem:[%s0 + $0x40] sm:$0xff]
  %v23 = vld [vmem:[%s0 + $0x48] sm:$0xff]
  %v24 = vld [vmem:[%s0 + $0x50] sm:$0xff]
  %v25 = vld [vmem:[%s0 + $0x58] sm:$0xff]
  %v26 = vld [vmem:[%s0 + $0x60] sm:$0xff]
  %v27 = vld [vmem:[%s0 + $0x68] sm:$0xff]
  %v28 = vld [vmem:[%s0 + $0x70] sm:$0xff]
  %v29 = vld [vmem:[%s0 + $0x78] sm:$0xff]
  %v30 = vld [vmem:[%s0 + $0x80] sm:$0xff]
  %v31 = vld [vmem:[%s0 + $0x88] sm:$0xff]
  %v32 = vld [vmem:[%s0 + $0x90] sm:$0xff]
  %v33 = vld [vmem:[%s0 + $0x98] sm:$0xff]
  %v34 = vld [vmem:[%s0 + $0xa0] sm:$0xff]
  %v35 = vld [vmem:[%s0 + $0xa8] sm:$0xff]
  %v36 = vld [vmem:[%s0 + $0xb0] sm:$0xff]
  %v37 = vld [vmem:[%s0 + $0xb8] sm:$0xff]
  %v38 = vld [vmem:[%s0 + $0xc0] sm:$0xff]
  %v39 = vld [vmem:[%s0 + $0xc8] sm:$0xff]
  %v40 = vld [vmem:[%s0 + $0xd0] sm:$0xff]
  %v41 = vld [vmem:[%s0 + $0xd8] sm:$0xff]
  %v42 = vld [vmem:[%s0 + $0xe0] sm:$0xff]
  %v43 = vld [vmem:[%s0 + $0xe8] sm:$0xff]
  %v44 = vld [vmem:[%s0 + $0xf0] sm:$0xff]
  %v45 = vld [vmem:[%s0 + $0xf8] sm:$0xff]
  %v46 = vld [vmem:[%s1] sm:$0xff]
  %v47 = vld [vmem:[%s1 + $0x8] sm:$0xff]
  %v48 = vld [vmem:[%s1 + $0x10] sm:$0xff]
  %v49 = vld [vmem:[%s1 + $0x18] sm:$0xff]
  %v50 = vld [vmem:[%s1 + $0x20] sm:$0xff]
  %v51 = vld [vmem:[%s1 + $0x28] sm:$0xff]
  %v52 = vld [vmem:[%s1 + $0x30] sm:$0xff]
  %v53 = vld [vmem:[%s1 + $0x38] sm:$0xff]
  %v54 = vld [vmem:[%s1 + $0x40] sm:$0xff]
  %v55 = vld [vmem:[%s1 + $0x48] sm:$0xff]
  %v56 = vld [vmem:[%s1 + $0x50] sm:$0xff]
  %v57 = vld [vmem:[%s1 + $0x58] sm:$0xff]
  %v58 = vld [vmem:[%s1 + $0x60] sm:$0xff]
  %v59 = vld [vmem:[%s1 + $0x68] sm:$0xff]
  %v60 = vld [vmem:[%s1 + $0x70] sm:$0xff]
  %v61 = vld [vmem:[%s1 + $0x78] sm:$0xff]
  %v62 = vld [vmem:[%s1 + $0x80] sm:$0xff]
  %v63 = vld [vmem:[%s1 + $0x88] sm:$0xff]
  %v64 = vld [vmem:[%s1 + $0x90] sm:$0xff]
  %v65 = vld [vmem:[%s1 + $0x98] sm:$0xff]
  %v66 = vld [vmem:[%s1 + $0xa0] sm:$0xff]
  %v67 = vld [vmem:[%s1 + $0xa8] sm:$0xff]
  %v68 = vld [vmem:[%s1 + $0xb0] sm:$0xff]
  %v69 = vld [vmem:[%s1 + $0xb8] sm:$0xff]
  %v70 = vld [vmem:[%s1 + $0xc0] sm:$0xff]
  %v71 = vld [vmem:[%s1 + $0xc8] sm:$0xff]
  %v72 = vld [vmem:[%s1 + $0xd0] sm:$0xff]
  %v73 = vld [vmem:[%s1 + $0xd8] sm:$0xff]
  %v74 = vld [vmem:[%s1 + $0xe0] sm:$0xff]
  %v75 = vld [vmem:[%s1 + $0xe8] sm:$0xff]
  %v76 = vld [vmem:[%s1 + $0xf0] sm:$0xff]
  %v77 = vld [vmem:[%s1 + $0xf8] sm:$0xff]
  %v78 = vld [vmem:[%s2] sm:$0x1]
  %v80 = vlaneseq
  %v81 = vshrl.u32 %v80, 7
  %v82 = vsub.s32 0, %v81
  %v83 = vrot.slane %v78, %v82
  %85 = vmatprep.subr.mxu0 0.0
  %86 = vmatpush1.msra.mxu0 %v46
  %87 = vmatprep.subr.mxu0 0.0
  %88 = vmatpush1.msra.mxu0 %v47
  %89 = vmatprep.subr.mxu0 0.0
  %90 = vmatpush1.msra.mxu0 %v48
  %91 = vmatprep.subr.mxu0 0.0
  %92 = vmatpush1.msra.mxu0 %v49
  %93 = vmatprep.subr.mxu0 0.0
  %94 = vmatpush1.msra.mxu0 %v50
  %95 = vmatprep.subr.mxu0 0.0
  %96 = vmatpush1.msra.mxu0 %v51
  %97 = vmatprep.subr.mxu0 0.0
  %98 = vmatpush1.msra.mxu0 %v52
  %99 = vmatprep.subr.mxu0 0.0
  %100 = vmatpush1.msra.mxu0 %v53
  %101 = vmatprep.subr.mxu0 0.0
  %102 = vmatpush1.msra.mxu0 %v54
  %103 = vmatprep.subr.mxu0 0.0
  %104 = vmatpush1.msra.mxu0 %v55
  %105 = vmatprep.subr.mxu0 0.0
  %106 = vmatpush1.msra.mxu0 %v56
  %107 = vmatprep.subr.mxu0 0.0
  %108 = vmatpush1.msra.mxu0 %v57
  %109 = vmatprep.subr.mxu0 0.0
  %110 = vmatpush1.msra.mxu0 %v58
  %111 = vmatprep.subr.mxu0 0.0
  %112 = vmatpush1.msra.mxu0 %v59
  %113 = vmatprep.subr.mxu0 0.0
  %114 = vmatpush1.msra.mxu0 %v60
  %115 = vmatprep.subr.mxu0 0.0
  %116 = vmatpush1.msra.mxu0 %v61
  %117 = vmatprep.subr.mxu0 0.0
  %118 = vmatpush1.msra.mxu0 %v62
  %119 = vmatprep.subr.mxu0 0.0
  %120 = vmatpush1.msra.mxu0 %v63
  %121 = vmatprep.subr.mxu0 0.0
  %122 = vmatpush1.msra.mxu0 %v64
  %123 = vmatprep.subr.mxu0 0.0
  %124 = vmatpush1.msra.mxu0 %v65
  %125 = vmatprep.subr.mxu0 0.0
  %126 = vmatpush1.msra.mxu0 %v66
  %127 = vmatprep.subr.mxu0 0.0
  %128 = vmatpush1.msra.mxu0 %v67
  %129 = vmatprep.subr.mxu0 0.0
  %130 = vmatpush1.msra.mxu0 %v68
  %131 = vmatprep.subr.mxu0 0.0
  %132 = vmatpush1.msra.mxu0 %v69
  %133 = vmatprep.subr.mxu0 0.0
  %134 = vmatpush1.msra.mxu0 %v70
  %135 = vmatprep.subr.mxu0 0.0
  %136 = vmatpush1.msra.mxu0 %v71
  %137 = vmatprep.subr.mxu0 0.0
  %138 = vmatpush1.msra.mxu0 %v72
  %139 = vmatprep.subr.mxu0 0.0
  %140 = vmatpush1.msra.mxu0 %v73
  %141 = vmatprep.subr.mxu0 0.0
  %142 = vmatpush1.msra.mxu0 %v74
  %143 = vmatprep.subr.mxu0 0.0
  %144 = vmatpush1.msra.mxu0 %v75
  %145 = vmatprep.subr.mxu0 0.0
  %146 = vmatpush1.msra.mxu0 %v76
  %147 = vmatprep.subr.mxu0 0.0
  %148 = vmatpush1.msra.mxu0 %v77
  %149 = vmatprep.mubr.f32.mxu0 %v15
  %150 = vmatmul.mubr.f32.gmra.mrb[0].mxu0 %v14
  %v151 = vpop.f32.mrb[0].mxu0
  %v152 = vadd.f32 %v83, %v151
  %v153 = vpop.f32.mrb[0].mxu0
  %154 = vmatprep.mubr.f32.mxu0 %v17
  %155 = vmatmul.mubr.f32.gmra.mrb[0].mxu0 %v16
  %v156 = vpop.f32.mrb[0].mxu0
  %v157 = vadd.f32 %v83, %v156
  %v158 = vpop.f32.mrb[0].mxu0
  %159 = vmatprep.mubr.f32.mxu0 %v19
  %160 = vmatmul.mubr.f32.gmra.mrb[0].mxu0 %v18
  %v161 = vpop.f32.mrb[0].mxu0
  %v162 = vadd.f32 %v83, %v161
  %v163 = vpop.f32.mrb[0].mxu0
  %164 = vmatprep.mubr.f32.mxu0 %v21
  %165 = vmatmul.mubr.f32.gmra.mrb[0].mxu0 %v20
  %v166 = vpop.f32.mrb[0].mxu0
  %v167 = vadd.f32 %v83, %v166
  %v168 = vpop.f32.mrb[0].mxu0
  %169 = vmatprep.mubr.f32.mxu0 %v23
  %170 = vmatmul.mubr.f32.gmra.mrb[0].mxu0 %v22
  %v171 = vpop.f32.mrb[0].mxu0
  %v172 = vadd.f32 %v83, %v171
  %v173 = vpop.f32.mrb[0].mxu0
  %174 = vmatprep.mubr.f32.mxu0 %v25
  %175 = vmatmul.mubr.f32.gmra.mrb[0].mxu0 %v24
  %v176 = vpop.f32.mrb[0].mxu0
  %v177 = vadd.f32 %v83, %v176
  %v178 = vpop.f32.mrb[0].mxu0
  %179 = vmatprep.mubr.f32.mxu0 %v27
  %180 = vmatmul.mubr.f32.gmra.mrb[0].mxu0 %v26
  %v181 = vpop.f32.mrb[0].mxu0
  %v182 = vadd.f32 %v83, %v181
  %v183 = vpop.f32.mrb[0].mxu0
  %184 = vmatprep.mubr.f32.mxu0 %v29
  %185 = vmatmul.mubr.f32.gmra.mrb[0].mxu0 %v28
  %v186 = vpop.f32.mrb[0].mxu0
  %v187 = vadd.f32 %v83, %v186
  %v188 = vpop.f32.mrb[0].mxu0
  %189 = vmatprep.mubr.f32.mxu0 %v31
  %190 = vmatmul.mubr.f32.gmra.mrb[0].mxu0 %v30
  %v191 = vpop.f32.mrb[0].mxu0
  %v192 = vadd.f32 %v83, %v191
  %v193 = vpop.f32.mrb[0].mxu0
  %194 = vmatprep.mubr.f32.mxu0 %v33
  %195 = vmatmul.mubr.f32.gmra.mrb[0].mxu0 %v32
  %v196 = vpop.f32.mrb[0].mxu0
  %v197 = vadd.f32 %v83, %v196
  %v198 = vpop.f32.mrb[0].mxu0
  %199 = vmatprep.mubr.f32.mxu0 %v35
  %200 = vmatmul.mubr.f32.gmra.mrb[0].mxu0 %v34
  %v201 = vpop.f32.mrb[0].mxu0
  %v202 = vadd.f32 %v83, %v201
  %v203 = vpop.f32.mrb[0].mxu0
  %204 = vmatprep.mubr.f32.mxu0 %v37
  %205 = vmatmul.mubr.f32.gmra.mrb[0].mxu0 %v36
  %v206 = vpop.f32.mrb[0].mxu0
  %v207 = vadd.f32 %v83, %v206
  %v208 = vpop.f32.mrb[0].mxu0
  %209 = vmatprep.mubr.f32.mxu0 %v39
  %210 = vmatmul.mubr.f32.gmra.mrb[0].mxu0 %v38
  %v211 = vpop.f32.mrb[0].mxu0
  %v212 = vadd.f32 %v83, %v211
  %v213 = vpop.f32.mrb[0].mxu0
  %214 = vmatprep.mubr.f32.mxu0 %v41
  %215 = vmatmul.mubr.f32.gmra.mrb[0].mxu0 %v40
  %v216 = vpop.f32.mrb[0].mxu0
  %v217 = vadd.f32 %v83, %v216
  %v218 = vpop.f32.mrb[0].mxu0
  %219 = vmatprep.mubr.f32.mxu0 %v43
  %220 = vmatmul.mubr.f32.gmra.mrb[0].mxu0 %v42
  %v221 = vpop.f32.mrb[0].mxu0
  %v222 = vadd.f32 %v83, %v221
  %v223 = vpop.f32.mrb[0].mxu0
  %224 = vmatprep.mubr.f32.mxu0 %v45
  %225 = vmatmul.mubr.f32.gmra.mrb[0].mxu0 %v44
  %v226 = vpop.f32.mrb[0].mxu0
  %v227 = vadd.f32 %v83, %v226
  %v228 = vpop.f32.mrb[0].mxu0
  %229 = vdwg.mxu0
  %v230 = vmax.f32 %v152, 0.0
  %v231 = vmax.f32 %v157, 0.0
  %v232 = vmax.f32 %v162, 0.0
  %v233 = vmax.f32 %v167, 0.0
  %v234 = vmax.f32 %v172, 0.0
  %v235 = vmax.f32 %v177, 0.0
  %v236 = vmax.f32 %v182, 0.0
  %v237 = vmax.f32 %v187, 0.0
  %v238 = vmax.f32 %v192, 0.0
  %v239 = vmax.f32 %v197, 0.0
  %v240 = vmax.f32 %v202, 0.0
  %v241 = vmax.f32 %v207, 0.0
  %v242 = vmax.f32 %v212, 0.0
  %v243 = vmax.f32 %v217, 0.0
  %v244 = vmax.f32 %v222, 0.0
  %v245 = vmax.f32 %v227, 0.0
  %vm246 = vcmask 261120
  %247 = vst.msk [vmem:[%s3] sm:$0xff] %vm246, %v230
  %248 = vst.msk [vmem:[%s3 + $0x8] sm:$0xff] %vm246, %v231
  %249 = vst.msk [vmem:[%s3 + $0x10] sm:$0xff] %vm246, %v232
  %250 = vst.msk [vmem:[%s3 + $0x18] sm:$0xff] %vm246, %v233
  %251 = vst.msk [vmem:[%s3 + $0x20] sm:$0xff] %vm246, %v234
  %252 = vst.msk [vmem:[%s3 + $0x28] sm:$0xff] %vm246, %v235
  %253 = vst.msk [vmem:[%s3 + $0x30] sm:$0xff] %vm246, %v236
  %254 = vst.msk [vmem:[%s3 + $0x38] sm:$0xff] %vm246, %v237
  %255 = vst.msk [vmem:[%s3 + $0x40] sm:$0xff] %vm246, %v238
  %256 = vst.msk [vmem:[%s3 + $0x48] sm:$0xff] %vm246, %v239
  %257 = vst.msk [vmem:[%s3 + $0x50] sm:$0xff] %vm246, %v240
  %258 = vst.msk [vmem:[%s3 + $0x58] sm:$0xff] %vm246, %v241
  %259 = vst.msk [vmem:[%s3 + $0x60] sm:$0xff] %vm246, %v242
  %260 = vst.msk [vmem:[%s3 + $0x68] sm:$0xff] %vm246, %v243
  %261 = vst.msk [vmem:[%s3 + $0x70] sm:$0xff] %vm246, %v244
  %262 = vst.msk [vmem:[%s3 + $0x78] sm:$0xff] %vm246, %v245
  // Predicated region
  $region14: #{tpu_custom_call.1} parent=0 // pred_check
    _
  $region15: #{tpu_custom_call.1} parent=0 // pred_check_branch
    %264 = sbr.rel (0) target = $region17
  $region16: #{tpu_custom_call.1} parent=0 // pred_region
    _
  $region17: #{tpu_custom_call.1} parent=0 // pred_fallthru
    _
  // Predicated region
  $region18: #{tpu_custom_call.1} parent=0 // pred_check
    _
  $region19: #{tpu_custom_call.1} parent=0 // pred_check_branch
    %266 = sbr.rel (0) target = $region21
  $region20: #{tpu_custom_call.1} parent=0 // pred_region
    _
  $region21: #{tpu_custom_call.1} parent=0 // pred_fallthru
    _

</llo_original>
